<compile_context>
chip_gen: v7x
topology: tpu7x:2x2x1
jax: 0.10.0
libtpu: 0.0.40
codegen_flags: <defaults>
</compile_context>

<pallas_src>
import functools
import math

import jax
import jax.numpy as jnp
from jax import lax
from jax.experimental import pallas as pl
from jax.experimental.pallas import tpu as pltpu

F32 = jnp.float32
BF16 = jnp.bfloat16
LANE = 128
EPS = 0.0  # GINConv default (train_eps=False).  A_hat = (1+eps)*I + A below.


def _round_up(x, m):
    return (x + m - 1) // m * m


# ---------------------------------------------------------------------------
# Fused per-graph kernel body: one grid step = one graph, weights stay resident.
# ---------------------------------------------------------------------------
def gin_fused_kernel(x_ref, ahat_ref, w_ref, o_ref, *, k1, row_b1, row_w2, row_b2):
    a = ahat_ref[0]                        # (N, N)    bf16
    x = x_ref[0]                           # (N, K1)   bf16  [features | 1 | 0-pad]

    wc = w_ref[0:k1, :]                    # (K1, 128) bf16  [[Wpre@W1],[bpre@W1], 0-pad]
    b1 = w_ref[row_b1:row_b1 + 1, :]       # (1, 128)
    w2 = w_ref[row_w2:row_w2 + LANE, :]    # (128, 128)
    b2 = w_ref[row_b2:row_b2 + 1, :]       # (1, 128)

    # conv_first (GINConv, eps=0) with linear_pre folded in:
    #   h1 = relu( (A_hat @ [x, 1]) @ [[Wpre@W1],[bpre@W1]] + b1 )
    m1 = jnp.dot(a, x, preferred_element_type=jnp.float32)                 # (N, K1) f32
    h1 = jnp.maximum(
        jnp.dot(m1.astype(BF16), wc, preferred_element_type=jnp.float32)
        + b1.astype(jnp.float32),
        0.0)                                                               # (N, 128) f32
    # TODO(synk): F.dropout(training=...) is a no-op in eval mode; no training path here.

    # conv_out (GINConv, eps=0):  h2 = (A_hat @ h1) @ W2 + b2
    m2 = jnp.dot(a, h1.astype(BF16), preferred_element_type=jnp.float32)   # (N, 128) f32
    h2 = (jnp.dot(m2.astype(BF16), w2, preferred_element_type=jnp.float32)
          + b2.astype(jnp.float32))                                        # (N, 128) f32

    # F.normalize(p=2, dim=-1): x / max(||x||, 1e-12) == x * rsqrt(max(ss, 1e-24)).
    # Padded lanes (>= output_dim) are exactly zero and remain zero.
    ss = jnp.sum(h2 * h2, axis=-1, keepdims=True)
    o_ref[0] = h2 * lax.rsqrt(jnp.maximum(ss, 1e-24))


# ---------------------------------------------------------------------------
# One-time weight folding + packing into a single lane-padded blob.
# ---------------------------------------------------------------------------
def prepare_params(wpre, bpre, w1, b1, w2, b2, *, dtype=BF16):
    in_dim, feat = wpre.shape
    hid = w1.shape[1]
    out = w2.shape[1]
    assert feat == w1.shape[0] and hid == w2.shape[0]
    assert hid <= LANE and out <= LANE

    k1 = _round_up(in_dim + 1, 8)       # rows of the folded first-layer weight section
    row_b1 = k1
    row_w2 = k1 + 8
    row_b2 = row_w2 + LANE
    rows = _round_up(row_b2 + 1, 8)

    # Fold linear_pre into conv_first_nn (valid because eps=0 and weights are static).
    wc = jnp.concatenate([wpre @ w1, bpre @ w1], axis=0)     # (in_dim+1, hid) f32

    blob = jnp.zeros((rows, LANE), F32)
    blob = blob.at[:in_dim + 1, :hid].set(wc)
    blob = blob.at[row_b1, :hid].set(b1.reshape(-1))
    blob = blob.at[row_w2:row_w2 + hid, :out].set(w2)
    blob = blob.at[row_b2, :out].set(b2.reshape(-1))

    layout = dict(k1=k1, row_b1=row_b1, row_w2=row_w2, row_b2=row_b2, out_dim=out)
    return blob.astype(dtype), layout


# ---------------------------------------------------------------------------
# Batched forward: x (B, N, in_dim) f32, a_hat (B, N, N) f32.
# ---------------------------------------------------------------------------
def gin_forward(x, a_hat, blob, *, k1, row_b1, row_w2, row_b2, out_dim):
    B, N, in_dim = x.shape
    dt = blob.dtype

    # Homogeneous coordinate (so linear_pre's bias folds into the first matmul),
    # pad to the blob's K1 rows, and cast MXU operands to bf16.
    x_aug = jnp.concatenate([x, jnp.ones((B, N, 1), x.dtype)], axis=-1)
    x_aug = jnp.pad(x_aug, ((0, 0), (0, 0), (0, k1 - in_dim - 1))).astype(dt)
    a_hat = a_hat.astype(dt)

    kernel = functools.partial(gin_fused_kernel, k1=k1, row_b1=row_b1,
                               row_w2=row_w2, row_b2=row_b2)
    out_padded = pl.pallas_call(
        kernel,
        out_shape=jax.ShapeDtypeStruct((B, N, LANE), F32),
        grid=(B,),
        in_specs=[
            pl.BlockSpec((1, N, k1), lambda b: (b, 0, 0)),     # per-graph x_aug
            pl.BlockSpec((1, N, N), lambda b: (b, 0, 0)),      # per-graph A_hat
            pl.BlockSpec(blob.shape, lambda b: (0, 0)),        # weights: DMA'd once
        ],
        out_specs=pl.BlockSpec((1, N, LANE), lambda b: (b, 0, 0)),
        compiler_params=pltpu.CompilerParams(dimension_semantics=("parallel",)),
    )(x_aug, a_hat, blob)
    return out_padded[:, :, :out_dim]


# ---------------------------------------------------------------------------
# Pure-JAX f32 reference (original, unfolded formulation) for validation.
# ---------------------------------------------------------------------------
def gin_reference(x, a_hat, wpre, bpre, w1, b1, w2, b2):
    h0 = x @ wpre + bpre
    h1 = jnp.maximum(jnp.einsum("bij,bjf->bif", a_hat, h0) @ w1 + b1, 0.0)
    h2 = jnp.einsum("bij,bjf->bif", a_hat, h1) @ w2 + b2
    nrm = jnp.maximum(jnp.sqrt(jnp.sum(h2 * h2, axis=-1, keepdims=True)), 1e-12)
    return h2 / nrm


def make_linear_params(key, in_dim, out_dim):
    kw, kb = jax.random.split(key)
    bound = 1.0 / math.sqrt(in_dim)
    w = jax.random.uniform(kw, (in_dim, out_dim), F32, -bound, bound)  # pre-transposed
    b = jax.random.uniform(kb, (1, out_dim), F32, -bound, bound)
    return w, b


if __name__ == "__main__":
    B, N = 8, 16                                    # graphs per batch, nodes per graph
    input_dim, feature_dim, hidden_dim, output_dim = 32, 32, 32, 16

    root = jax.random.PRNGKey(0)
    keys = jax.random.split(root, 4)

    # node features
    x = jax.random.normal(keys[0], (B, N, input_dim), F32)

    # Deterministic per-graph edge sets: bidirectional ring + per-graph shifted ring,
    # scatter-added into dense A, then A_hat = (1+eps)*I + A (eps = 0).
    def build_a_hat(n, shift):
        i = jnp.arange(n)
        src = jnp.concatenate([i, (i + 1) % n, i, (i + shift) % n])
        dst = jnp.concatenate([(i + 1) % n, i, (i + shift) % n, i])
        adj = jnp.zeros((n, n), F32).at[dst, src].add(1.0)
        return adj + (1.0 + EPS) * jnp.eye(n, dtype=F32)

    a_hat = jnp.stack([build_a_hat(N, 2 + (g % 5)) for g in range(B)])

    # parameters (torch.nn.Linear-style init, weights pre-transposed to (in, out))
    wpre, bpre = make_linear_params(keys[1], input_dim, feature_dim)    # linear_pre
    w1, b1 = make_linear_params(keys[2], feature_dim, hidden_dim)       # conv_first_nn
    w2, b2 = make_linear_params(keys[3], hidden_dim, output_dim)        # conv_out_nn

    blob, layout = prepare_params(wpre, bpre, w1, b1, w2, b2)

    fwd = jax.jit(functools.partial(gin_forward, **layout))
    out = jax.block_until_ready(fwd(x, a_hat, blob))

    assert out.shape == (B, N, output_dim), out.shape
    assert bool(jnp.all(jnp.isfinite(out)))

    # rows must be unit-norm after F.normalize (computed on the f32 accumulator in-kernel)
    norms = jnp.sqrt(jnp.sum(out * out, axis=-1))
    assert bool(jnp.all(jnp.abs(norms - 1.0) < 1e-3)), float(jnp.max(jnp.abs(norms - 1.0)))

    # compare against the pure-JAX f32 reference (bf16 MXU operands => loose tolerance)
    ref = gin_reference(x, a_hat, wpre, bpre, w1, b1, w2, b2)
    max_err = float(jnp.max(jnp.abs(out - ref)))
    assert max_err < 5e-2, max_err

    print("KERNEL_OK")
</pallas_src>

<mosaic_0001>
module attributes {stable_mosaic.version = 11 : i64} {
  func.func @gin_fused_kernel(%arg0: i32, %arg1: memref<1x16x40xbf16, #tpu.memory_space<vmem>>, %arg2: memref<1x16x16xbf16, #tpu.memory_space<vmem>>, %arg3: memref<184x128xbf16, #tpu.memory_space<vmem>>, %arg4: memref<1x16x128xf32, #tpu.memory_space<vmem>>) attributes {dimension_semantics = [#tpu.dimension_semantics<parallel>], iteration_bounds = array<i64: 8>, scalar_prefetch = 0 : i64, scratch_operands = 0 : i64, tpu.core_type = #tpu.core_type<tc>, window_params = [{transform_indices = @transform_0, window_bounds = array<i64: 1, 16, 40>}, {transform_indices = @transform_1, window_bounds = array<i64: 1, 16, 16>}, {pipeline_mode = #tpu.pipeline_mode<synchronous>, transform_indices = @transform_2, window_bounds = array<i64: 184, 128>}, {transform_indices = @transform_3, window_bounds = array<i64: 1, 16, 128>}]} {
    %c0 = arith.constant 0 : index
    %c0_0 = arith.constant 0 : index
    %c0_1 = arith.constant 0 : index
    %0 = vector.load %arg2[%c0, %c0_0, %c0_1] : memref<1x16x16xbf16, #tpu.memory_space<vmem>>, vector<1x16x16xbf16>
    %1 = vector.shape_cast %0 : vector<1x16x16xbf16> to vector<16x16xbf16>
    %c0_2 = arith.constant 0 : index
    %c0_3 = arith.constant 0 : index
    %c0_4 = arith.constant 0 : index
    %2 = vector.load %arg1[%c0_2, %c0_3, %c0_4] : memref<1x16x40xbf16, #tpu.memory_space<vmem>>, vector<1x16x40xbf16>
    %3 = vector.shape_cast %2 : vector<1x16x40xbf16> to vector<16x40xbf16>
    %c0_5 = arith.constant 0 : index
    %c0_6 = arith.constant 0 : index
    %4 = vector.load %arg3[%c0_5, %c0_6] : memref<184x128xbf16, #tpu.memory_space<vmem>>, vector<40x128xbf16>
    %c40 = arith.constant 40 : index
    %c0_7 = arith.constant 0 : index
    %5 = vector.load %arg3[%c40, %c0_7] : memref<184x128xbf16, #tpu.memory_space<vmem>>, vector<1x128xbf16>
    %c48 = arith.constant 48 : index
    %c0_8 = arith.constant 0 : index
    %6 = vector.load %arg3[%c48, %c0_8] : memref<184x128xbf16, #tpu.memory_space<vmem>>, vector<128x128xbf16>
    %c176 = arith.constant 176 : index
    %c0_9 = arith.constant 0 : index
    %7 = vector.load %arg3[%c176, %c0_9] : memref<184x128xbf16, #tpu.memory_space<vmem>>, vector<1x128xbf16>
    %cst = arith.constant dense<0.000000e+00> : vector<16x40xf32>
    %8 = tpu.matmul %1, %3, %cst {dimension_numbers = #tpu.dot_dimension_numbers<[1], [0], [0], [1], [0, 0, 1, 1], [], []>} : vector<16x16xbf16>, vector<16x40xbf16>, vector<16x40xf32> -> vector<16x40xf32>
    %9 = arith.truncf %8 : vector<16x40xf32> to vector<16x40xbf16>
    %cst_10 = arith.constant dense<0.000000e+00> : vector<16x128xf32>
    %10 = tpu.matmul %9, %4, %cst_10 {dimension_numbers = #tpu.dot_dimension_numbers<[1], [0], [0], [1], [0, 0, 1, 1], [], []>} : vector<16x40xbf16>, vector<40x128xbf16>, vector<16x128xf32> -> vector<16x128xf32>
    %11 = arith.extf %5 : vector<1x128xbf16> to vector<1x128xf32>
    %12 = vector.broadcast %11 : vector<1x128xf32> to vector<16x128xf32>
    %13 = arith.addf %10, %12 : vector<16x128xf32>
    %cst_11 = arith.constant 0.000000e+00 : f32
    %14 = vector.broadcast %cst_11 : f32 to vector<16x128xf32>
    %15 = arith.maximumf %13, %14 : vector<16x128xf32>
    %16 = arith.truncf %15 : vector<16x128xf32> to vector<16x128xbf16>
    %cst_12 = arith.constant dense<0.000000e+00> : vector<16x128xf32>
    %17 = tpu.matmul %1, %16, %cst_12 {dimension_numbers = #tpu.dot_dimension_numbers<[1], [0], [0], [1], [0, 0, 1, 1], [], []>} : vector<16x16xbf16>, vector<16x128xbf16>, vector<16x128xf32> -> vector<16x128xf32>
    %18 = arith.truncf %17 : vector<16x128xf32> to vector<16x128xbf16>
    %cst_13 = arith.constant dense<0.000000e+00> : vector<16x128xf32>
    %19 = tpu.matmul %18, %6, %cst_13 {dimension_numbers = #tpu.dot_dimension_numbers<[1], [0], [0], [1], [0, 0, 1, 1], [], []>} : vector<16x128xbf16>, vector<128x128xbf16>, vector<16x128xf32> -> vector<16x128xf32>
    %20 = arith.extf %7 : vector<1x128xbf16> to vector<1x128xf32>
    %21 = vector.broadcast %20 : vector<1x128xf32> to vector<16x128xf32>
    %22 = arith.addf %19, %21 : vector<16x128xf32>
    %23 = arith.mulf %22, %22 : vector<16x128xf32>
    %cst_14 = arith.constant dense<0.000000e+00> : vector<16xf32>
    %24 = vector.multi_reduction <add>, %23, %cst_14 [1] : vector<16x128xf32> to vector<16xf32>
    %25 = vector.shape_cast %24 : vector<16xf32> to vector<16x1xf32>
    %cst_15 = arith.constant 1.000000e-24 : f32
    %26 = vector.broadcast %cst_15 : f32 to vector<16x1xf32>
    %27 = arith.maximumf %25, %26 : vector<16x1xf32>
    %28 = math.rsqrt %27 : vector<16x1xf32>
    %29 = vector.broadcast %28 : vector<16x1xf32> to vector<16x128xf32>
    %30 = arith.mulf %22, %29 : vector<16x128xf32>
    %c0_16 = arith.constant 0 : index
    %c0_17 = arith.constant 0 : index
    %c0_18 = arith.constant 0 : index
    %31 = vector.load %arg4[%c0_16, %c0_17, %c0_18] : memref<1x16x128xf32, #tpu.memory_space<vmem>>, vector<1x16x128xf32>
    %32 = vector.shape_cast %31 : vector<1x16x128xf32> to vector<16x128xf32>
    %33 = vector.shape_cast %30 : vector<16x128xf32> to vector<1x16x128xf32>
    tpu.vector_store %arg4[%c0_16, %c0_17, %c0_18], %33 {strides = array<i32>} : memref<1x16x128xf32, #tpu.memory_space<vmem>>, vector<1x16x128xf32>,
    return
  }
  func.func @transform_0(%arg0: i32) -> (i32, i32, i32) {
    %c0_i32 = arith.constant 0 : i32
    %c0_i32_0 = arith.constant 0 : i32
    %c0_i32_1 = arith.constant 0 : i32
    return %arg0, %c0_i32, %c0_i32_0 : i32, i32, i32
  }
  func.func @transform_1(%arg0: i32) -> (i32, i32, i32) {
    %c0_i32 = arith.constant 0 : i32
    %c0_i32_0 = arith.constant 0 : i32
    %c0_i32_1 = arith.constant 0 : i32
    return %arg0, %c0_i32, %c0_i32_0 : i32, i32, i32
  }
  func.func @transform_2(%arg0: i32) -> (i32, i32) {
    %c0_i32 = arith.constant 0 : i32
    %c0_i32_0 = arith.constant 0 : i32
    %c0_i32_1 = arith.constant 0 : i32
    return %c0_i32, %c0_i32_0 : i32, i32
  }
  func.func @transform_3(%arg0: i32) -> (i32, i32, i32) {
    %c0_i32 = arith.constant 0 : i32
    %c0_i32_0 = arith.constant 0 : i32
    %c0_i32_1 = arith.constant 0 : i32
    return %arg0, %c0_i32, %c0_i32_0 : i32, i32, i32
  }
}

</mosaic_0001>

<llo_original>
// kernel: gin_forward.1
$region0: #{gin_forward.1}
  #allocation0 [shape = 'u32[]', space=smem, size = 0x4, offset = 0x4, fixed_abs, tag = 'smem constant byte address 0x4 - core index']
  #allocation1 [shape = 'u32[144,128]{1,0:T(1,128)}', space=vmem, size = 0x12000, scoped, tag = 'internal scratch']
  %s0 = inlined_call_operand.vmem [shape: bf16[8,16,40], index: 0, kind: input, shape index: {}]
  %s1 = inlined_call_operand.vmem [shape: bf16[8,16,16], index: 1, kind: input, shape index: {}]
  %s2 = inlined_call_operand.vmem [shape: bf16[184,128], index: 2, kind: input, shape index: {}]
  %s3 = inlined_call_operand.hbm [shape: f32[8,16,128], index: 3, kind: output, shape index: {}]
  %s4 = sld [smem:[#allocation0]]
  $region45: #{gin_forward.1} parent=0
    _
  %s6 = ssub.s32 1, %s4
  %s7 = scalar_select 0, %s6, %s4
  $region1: #{gin_forward.1} parent=0
    #allocation2 [shape = 'u8[16384]{0}', space=vmem, size = 0x4000, scoped, tag = 'output window, operand 0']
    #allocation3 [shape = 's32[2]{0}', space=sflag, size = 0x8, scoped, tag = 'scoped memory for gin_forward.1']
    %8 = vsyncpa [#allocation3], 0
    %s9 = scalar_lea.sflag [#allocation3], 1
    %10 = vsyncpa %s9, 0
    loop: start=0, step=1, limit=10
    $region2: #{gin_forward.1} parent=1 // loop_pre_header
      _
    $region3: #{gin_forward.1} parent=1 // loop_header
      %s12 = sphi 0, %s16
      %p13 = scmp.ge.s32.totalorder %s12, 10
      %s22 = sphi 0, %s24
      %s25 = sphi 0, %s22
      %s26 = sphi 0, %s25
      %s42 = sphi 0, %s26
      %s48 = sphi 0, %s50
      %s51 = sphi 0, %s48
      %s52 = sphi 0, %s51
      %s68 = sphi 0, %s52
      %s72 = sphi 0, %s72
      %s74 = sphi 0, %s72
      %s75 = sphi 0, %s74
      %s89 = sphi 0, %s75
      %s95 = sphi 0, %s97
      %s98 = sphi 0, %s95
      %s99 = sphi 0, %s98
      %s115 = sphi 0, %s99
    $region4: #{gin_forward.1} parent=1 // loop_header_branch
      %15 = sbr.rel (%p13) target = $region8
    $region5: #{gin_forward.1} parent=1 // loop_body
      %s17 = ssub.s32 %s12, 1
      %s18 = ssub.s32 %s12, 2
      %s19 = sadd.s32 %s12, 1
      %s20 = ssub.s32 %s12, %s19
      %p21 = scmp.eq.s32.totalorder %s20, 0
      %s23 = sadd.s32 %s22, 1
      %s24 = scalar_select %p21, %s22, %s23
      %p27 = pneg %p21
      %p28 = scmp.eq.s32.totalorder %s12, 7
      %p29 = por %p27, %p28
      %p30 = scmp.ne.s32.totalorder %s22, %s25
      %p31 = scmp.eq.s32.totalorder %s12, 0
      %p32 = por %p30, %p31
      %p33 = scmp.ne.s32.totalorder %s22, %s25
      %p34 = scmp.eq.s32.totalorder %s17, 7
      %p35 = por %p33, %p34
      %p36 = scmp.ne.s32.totalorder %s25, %s26
      %p37 = scmp.eq.s32.totalorder %s17, 0
      %p38 = por %p36, %p37
      %p39 = scmp.ne.s32.totalorder %s25, %s26
      %p40 = scmp.eq.s32.totalorder %s18, 7
      %p41 = por %p39, %p40
      %p43 = scmp.ne.s32.totalorder %s26, %s42
      %p44 = scmp.eq.s32.totalorder %s18, 0
      %p45 = por %p43, %p44
      %s46 = ssub.s32 %s12, %s19
      %p47 = scmp.eq.s32.totalorder %s46, 0
      %s49 = sadd.s32 %s48, 1
      %s50 = scalar_select %p47, %s48, %s49
      %p53 = pneg %p47
      %p54 = scmp.eq.s32.totalorder %s12, 7
      %p55 = por %p53, %p54
      %p56 = scmp.ne.s32.totalorder %s48, %s51
      %p57 = scmp.eq.s32.totalorder %s12, 0
      %p58 = por %p56, %p57
      %p59 = scmp.ne.s32.totalorder %s48, %s51
      %p60 = scmp.eq.s32.totalorder %s17, 7
      %p61 = por %p59, %p60
      %p62 = scmp.ne.s32.totalorder %s51, %s52
      %p63 = scmp.eq.s32.totalorder %s17, 0
      %p64 = por %p62, %p63
      %p65 = scmp.ne.s32.totalorder %s51, %s52
      %p66 = scmp.eq.s32.totalorder %s18, 7
      %p67 = por %p65, %p66
      %p69 = scmp.ne.s32.totalorder %s52, %s68
      %p70 = scmp.eq.s32.totalorder %s18, 0
      %p71 = por %p69, %p70
      %s73 = sadd.s32 %s72, 1
      %p76 = scmp.eq.s32.totalorder %s12, 7
      %p77 = scmp.ne.s32.totalorder %s72, %s74
      %p78 = scmp.eq.s32.totalorder %s12, 0
      %p79 = por %p77, %p78
      %p80 = scmp.ne.s32.totalorder %s72, %s74
      %p81 = scmp.eq.s32.totalorder %s17, 7
      %p82 = por %p80, %p81
      %p83 = scmp.ne.s32.totalorder %s74, %s75
      %p84 = scmp.eq.s32.totalorder %s17, 0
      %p85 = por %p83, %p84
      %p86 = scmp.ne.s32.totalorder %s74, %s75
      %p87 = scmp.eq.s32.totalorder %s18, 7
      %p88 = por %p86, %p87
      %p90 = scmp.ne.s32.totalorder %s75, %s89
      %p91 = scmp.eq.s32.totalorder %s18, 0
      %p92 = por %p90, %p91
      %s93 = ssub.s32 %s12, %s19
      %p94 = scmp.eq.s32.totalorder %s93, 0
      %s96 = sadd.s32 %s95, 1
      %s97 = scalar_select %p94, %s95, %s96
      %p100 = pneg %p94
      %p101 = scmp.eq.s32.totalorder %s12, 7
      %p102 = por %p100, %p101
      %p103 = scmp.ne.s32.totalorder %s95, %s98
      %p104 = scmp.eq.s32.totalorder %s12, 0
      %p105 = por %p103, %p104
      %p106 = scmp.ne.s32.totalorder %s95, %s98
      %p107 = scmp.eq.s32.totalorder %s17, 7
      %p108 = por %p106, %p107
      %p109 = scmp.ne.s32.totalorder %s98, %s99
      %p110 = scmp.eq.s32.totalorder %s17, 0
      %p111 = por %p109, %p110
      %p112 = scmp.ne.s32.totalorder %s98, %s99
      %p113 = scmp.eq.s32.totalorder %s18, 7
      %p114 = por %p112, %p113
      %p116 = scmp.ne.s32.totalorder %s99, %s115
      %p117 = scmp.eq.s32.totalorder %s18, 0
      %p118 = por %p116, %p117
      %p119 = scmp.le.s32.totalorder 1, %s12
      %p120 = scmp.lt.s32.totalorder %s12, 9
      %p121 = pnand %p119, %p120
      %p122 = pneg %p121
      // Predicated region
      $region9: #{gin_forward.1} parent=5 // pred_check
        _
      $region10: #{gin_forward.1} parent=5 // pred_check_branch
        %124 = sbr.rel (%p121) target = $region12
      $region11: #{gin_forward.1} parent=5 // pred_region
        %s125 = ssub.s32 %s12, 1
        // Predicated region
        $region13: #{gin_forward.1} parent=11 // pred_check
          %p126 = pneg %p85
        $region14: #{gin_forward.1} parent=11 // pred_check_branch
          %128 = sbr.rel (%p126) target = $region16
        $region15: #{gin_forward.1} parent=11 // pred_region
          _
        $region16: #{gin_forward.1} parent=11 // pred_fallthru
          _
      $region12: #{gin_forward.1} parent=5 // pred_fallthru
        _
      %p129 = scmp.lt.s32.totalorder %s12, 8
      // Predicated region
      $region17: #{gin_forward.1} parent=5 // pred_check
        %p130 = pneg %p129
      $region18: #{gin_forward.1} parent=5 // pred_check_branch
        %132 = sbr.rel (%p130) target = $region20
      $region19: #{gin_forward.1} parent=5 // pred_region
        // Predicated region
        $region21: #{gin_forward.1} parent=19 // pred_check
          %p133 = pneg %p32
        $region22: #{gin_forward.1} parent=19 // pred_check_branch
          %135 = sbr.rel (%p133) target = $region24
        $region23: #{gin_forward.1} parent=19 // pred_region
          %p136 = scmp.lt.s32.totalorder %s12, 7
          %s137 = scalar_select %p136, %s12, 7
          %s138 = smul.addr %s137, 2
          %s139 = smul.addr %s138, 4
          %s140 = scalar_lea.vmem %s0, %s139
        $region24: #{gin_forward.1} parent=19 // pred_fallthru
          _
        // Predicated region
        $region25: #{gin_forward.1} parent=19 // pred_check
          %p141 = pneg %p58
        $region26: #{gin_forward.1} parent=19 // pred_check_branch
          %143 = sbr.rel (%p141) target = $region28
        $region27: #{gin_forward.1} parent=19 // pred_region
          %p144 = scmp.lt.s32.totalorder %s12, 7
          %s145 = scalar_select %p144, %s12, 7
          %s146 = smul.addr %s145, 2
          %s147 = smul.addr %s146, 4
          %s148 = scalar_lea.vmem %s1, %s147
        $region28: #{gin_forward.1} parent=19 // pred_fallthru
          _
      $region20: #{gin_forward.1} parent=5 // pred_fallthru
        _
      %p149 = scmp.le.s32.totalorder 1, %s12
      %p150 = scmp.lt.s32.totalorder %s12, 9
      %p151 = pnand %p149, %p150
      %p152 = pneg %p151
      // Predicated region
      $region29: #{gin_forward.1} parent=5 // pred_check
        _
      $region30: #{gin_forward.1} parent=5 // pred_check_branch
        %154 = sbr.rel (%p151) target = $region32
      $region31: #{gin_forward.1} parent=5 // pred_region
        %s155 = ssub.s32 %s12, 1
        %p156 = scmp.lt.s32.totalorder %s17, 7
        %s157 = scalar_select %p156, %s17, 7
        %s158 = smul.addr %s157, 2
        %s159 = smul.addr %s158, 4
        %s160 = scalar_lea.vmem %s0, %s159
        %p161 = pneg %p38
        %p162 = pneg %p35
        %p163 = scmp.lt.s32.totalorder %s17, 7
        %s164 = scalar_select %p163, %s17, 7
        %s165 = smul.addr %s164, 2
        %s166 = smul.addr %s165, 4
        %s167 = scalar_lea.vmem %s1, %s166
        %p168 = pneg %p64
        %p169 = pneg %p61
        %p170 = pneg %p85
        %p171 = pneg %p82
        %p172 = pneg %p111
        %p173 = pneg %p108
        %s174 = sand.u32 %s98, 1
        %s175 = scalar_lea.sflag [#allocation3], %s174
        %s176 = sand.u32 %s98, 1
        %s177 = smul.addr %s176, 16
        %s178 = scalar_lea.vmem [#allocation2], %s177
        %p179 = scmp.lt.s32.totalorder %s17, 7
        %s180 = scalar_select %p179, %s17, 7
        %s181 = smul.addr %s180, 2
        %s182 = smul.addr %s181, 4
        %s183 = scalar_lea.vmem %s0, %s182
        %p184 = scmp.lt.s32.totalorder %s17, 7
        %s185 = scalar_select %p184, %s17, 7
        %s186 = smul.addr %s185, 2
        %s187 = smul.addr %s186, 4
        %s188 = scalar_lea.vmem %s1, %s187
        %v190 = vld [vmem:[%s188] sm:$0xf]
        %v191 = vld [vmem:[%s188 + $0x4] sm:$0xf]
        %v192 = vld [vmem:[%s183] sm:$0xf]
        %v193 = vld [vmem:[%s183 + $0x4] sm:$0xf]
        %v194 = vld [vmem:[%s2] sm:$0xf]
        %v195 = vld [vmem:[%s2 + $0x4] sm:$0xf]
        %v196 = vld [vmem:[%s2 + $0x8] sm:$0xf]
        %v197 = vld [vmem:[%s2 + $0xc] sm:$0xf]
        %v198 = vld [vmem:[%s2 + $0x10] sm:$0xf]
        %v199 = vld [vmem:[%s2 + $0x14] sm:$0x1]
        %v200 = vld [vmem:[%s2 + $0x18] sm:$0xf]
        %v201 = vld [vmem:[%s2 + $0x1c] sm:$0xf]
        %v202 = vld [vmem:[%s2 + $0x20] sm:$0xf]
        %v203 = vld [vmem:[%s2 + $0x24] sm:$0xf]
        %v204 = vld [vmem:[%s2 + $0x28] sm:$0xf]
        %v205 = vld [vmem:[%s2 + $0x2c] sm:$0xf]
        %v206 = vld [vmem:[%s2 + $0x30] sm:$0xf]
        %v207 = vld [vmem:[%s2 + $0x34] sm:$0xf]
        %v208 = vld [vmem:[%s2 + $0x38] sm:$0xf]
        %v209 = vld [vmem:[%s2 + $0x3c] sm:$0xf]
        %v210 = vld [vmem:[%s2 + $0x40] sm:$0xf]
        %v211 = vld [vmem:[%s2 + $0x44] sm:$0xf]
        %v212 = vld [vmem:[%s2 + $0x48] sm:$0xf]
        %v213 = vld [vmem:[%s2 + $0x4c] sm:$0xf]
        %v214 = vld [vmem:[%s2 + $0x50] sm:$0xf]
        %v215 = vld [vmem:[%s2 + $0x54] sm:$0xf]
        %v216 = vld [vmem:[%s2 + $0x58] sm:$0x1]
        %v219 = vunpack.c.l.b16 %v190
        %v220 = vunpack.c.l.b16 %v191
        %v221 = vpack.c.b16 %v220, %v219
        %v224 = vunpack.c.l.b16 %v192
        %v225 = vunpack.c.l.b16 %v193
        %v226 = vpack.c.b16 %v225, %v224
        %vm228 = vcmask 130048
        %v230 = vsel %vm228, %v221, 0
        %232 = vmatprep.subr.bf16.mxu0 0
        %233 = vmatpush1.bf16.msra.mxu0 %v226
        %234 = vmatprep.subr.bf16.mxu0 0
        %235 = vmatpush1.bf16.msra.mxu0 0
        %236 = vmatprep.subr.bf16.mxu0 0
        %237 = vmatpush1.bf16.msra.mxu0 0
        %238 = vmatprep.subr.bf16.mxu0 0
        %239 = vmatpush1.bf16.msra.mxu0 0
        %240 = vmatprep.subr.bf16.mxu0 0
        %241 = vmatpush1.bf16.msra.mxu0 0
        %242 = vmatprep.subr.bf16.mxu0 0
        %243 = vmatpush1.bf16.msra.mxu0 0
        %244 = vmatprep.subr.bf16.mxu0 0
        %245 = vmatpush1.bf16.msra.mxu0 0
        %246 = vmatprep.subr.bf16.mxu0 0
        %247 = vmatpush1.bf16.msra.mxu0 0
        %248 = vmatprep.subr.bf16.mxu0 0
        %249 = vmatpush1.bf16.msra.mxu0 0
        %250 = vmatprep.subr.bf16.mxu0 0
        %251 = vmatpush1.bf16.msra.mxu0 0
        %252 = vmatprep.subr.bf16.mxu0 0
        %253 = vmatpush1.bf16.msra.mxu0 0
        %254 = vmatprep.subr.bf16.mxu0 0
        %255 = vmatpush1.bf16.msra.mxu0 0
        %256 = vmatprep.subr.bf16.mxu0 0
        %257 = vmatpush1.bf16.msra.mxu0 0
        %258 = vmatprep.subr.bf16.mxu0 0
        %259 = vmatpush1.bf16.msra.mxu0 0
        %260 = vmatprep.subr.bf16.mxu0 0
        %261 = vmatpush1.bf16.msra.mxu0 0
        %262 = vmatprep.subr.bf16.mxu0 0
        %263 = vmatpush1.bf16.msra.mxu0 0
        %264 = vmatprep.mubr.bf16.mxu0 0
        %265 = vmatmul.mubr.bf16.gmra.mrb[0].mxu0 %v230
        %v266 = vpop.f32.mrb[0].mxu0
        %v267 = vadd.f32 0.0, %v266
        %v268 = vpop.f32.mrb[0].mxu0
        %v269 = vpop.f32.mrb[0].mxu0
        %v270 = vadd.f32 0.0, %v269
        %v271 = vpop.f32.mrb[0].mxu0
        %272 = vdwg.mxu0
        %v273 = vpack.c.bf16 %v270, %v267
        %v274 = vunpack.c.l.bf16 %v199
        %v275 = vlaneseq
        %v276 = vshrl.u32 %v275, 7
        %v277 = vsub.s32 0, %v276
        %v278 = vrot.slane %v274, %v277
        %v284 = vunpack.c.l.b16 %v194
        %v285 = vunpack.c.l.b16 %v195
        %v286 = vunpack.c.l.b16 %v196
        %v287 = vunpack.c.l.b16 %v197
        %v288 = vunpack.c.l.b16 %v198
        %v289 = vpack.c.b16 %v285, %v284
        %v290 = vpack.c.b16 %v287, %v286
        %v291 = vpack.c.b16 %v288, %v288
        %vm294 = vcmask 326656
        %v296 = vsel %vm294, %v273, 0
        %vm298 = vcmask 1043456
        %v300 = vsel %vm298, %v291, 0
        %302 = vmatprep.subr.bf16.mxu0 0
        %303 = vmatpush1.bf16.msra.mxu0 %v289
        %304 = vmatprep.subr.bf16.mxu0 0
        %305 = vmatpush1.bf16.msra.mxu0 %v290
        %306 = vmatprep.subr.bf16.mxu0 0
        %307 = vmatpush1.bf16.msra.mxu0 %v300
        %308 = vmatprep.subr.bf16.mxu0 0
        %309 = vmatpush1.bf16.msra.mxu0 0
        %310 = vmatprep.subr.bf16.mxu0 0
        %311 = vmatpush1.bf16.msra.mxu0 0
        %312 = vmatprep.subr.bf16.mxu0 0
        %313 = vmatpush1.bf16.msra.mxu0 0
        %314 = vmatprep.subr.bf16.mxu0 0
        %315 = vmatpush1.bf16.msra.mxu0 0
        %316 = vmatprep.subr.bf16.mxu0 0
        %317 = vmatpush1.bf16.msra.mxu0 0
        %318 = vmatprep.subr.bf16.mxu0 0
        %319 = vmatpush1.bf16.msra.mxu0 0
        %320 = vmatprep.subr.bf16.mxu0 0
        %321 = vmatpush1.bf16.msra.mxu0 0
        %322 = vmatprep.subr.bf16.mxu0 0
        %323 = vmatpush1.bf16.msra.mxu0 0
        %324 = vmatprep.subr.bf16.mxu0 0
        %325 = vmatpush1.bf16.msra.mxu0 0
        %326 = vmatprep.subr.bf16.mxu0 0
        %327 = vmatpush1.bf16.msra.mxu0 0
        %328 = vmatprep.subr.bf16.mxu0 0
        %329 = vmatpush1.bf16.msra.mxu0 0
        %330 = vmatprep.subr.bf16.mxu0 0
        %331 = vmatpush1.bf16.msra.mxu0 0
        %332 = vmatprep.subr.bf16.mxu0 0
        %333 = vmatpush1.bf16.msra.mxu0 0
        %334 = vmatprep.mubr.bf16.mxu0 0
        %335 = vmatmul.mubr.bf16.gmra.mrb[0].mxu0 %v296
        %v336 = vpop.f32.mrb[0].mxu0
        %v337 = vadd.f32 %v278, %v336
        %v338 = vpop.f32.mrb[0].mxu0
        %v339 = vpop.f32.mrb[0].mxu0
        %v340 = vadd.f32 %v278, %v339
        %v341 = vpop.f32.mrb[0].mxu0
        %342 = vdwg.mxu0
        %v343 = vmax.f32 %v337, 0.0
        %v344 = vmax.f32 %v340, 0.0
        %v345 = vpack.c.bf16 %v344, %v343
        %346 = vmatprep.subr.bf16.mxu0 0
        %347 = vmatpush1.bf16.msra.mxu0 %v345
        %348 = vmatprep.subr.bf16.mxu0 0
        %349 = vmatpush1.bf16.msra.mxu0 0
        %350 = vmatprep.subr.bf16.mxu0 0
        %351 = vmatpush1.bf16.msra.mxu0 0
        %352 = vmatprep.subr.bf16.mxu0 0
        %353 = vmatpush1.bf16.msra.mxu0 0
        %354 = vmatprep.subr.bf16.mxu0 0
        %355 = vmatpush1.bf16.msra.mxu0 0
        %356 = vmatprep.subr.bf16.mxu0 0
        %357 = vmatpush1.bf16.msra.mxu0 0
        %358 = vmatprep.subr.bf16.mxu0 0
        %359 = vmatpush1.bf16.msra.mxu0 0
        %360 = vmatprep.subr.bf16.mxu0 0
        %361 = vmatpush1.bf16.msra.mxu0 0
        %362 = vmatprep.subr.bf16.mxu0 0
        %363 = vmatpush1.bf16.msra.mxu0 0
        %364 = vmatprep.subr.bf16.mxu0 0
        %365 = vmatpush1.bf16.msra.mxu0 0
        %366 = vmatprep.subr.bf16.mxu0 0
        %367 = vmatpush1.bf16.msra.mxu0 0
        %368 = vmatprep.subr.bf16.mxu0 0
        %369 = vmatpush1.bf16.msra.mxu0 0
        %370 = vmatprep.subr.bf16.mxu0 0
        %371 = vmatpush1.bf16.msra.mxu0 0
        %372 = vmatprep.subr.bf16.mxu0 0
        %373 = vmatpush1.bf16.msra.mxu0 0
        %374 = vmatprep.subr.bf16.mxu0 0
        %375 = vmatpush1.bf16.msra.mxu0 0
        %376 = vmatprep.subr.bf16.mxu0 0
        %377 = vmatpush1.bf16.msra.mxu0 0
        %378 = vmatprep.mubr.bf16.mxu0 0
        %379 = vmatmul.mubr.bf16.gmra.mrb[0].mxu0 %v230
        %v380 = vpop.f32.mrb[0].mxu0
        %v381 = vadd.f32 0.0, %v380
        %v382 = vpop.f32.mrb[0].mxu0
        %v383 = vpop.f32.mrb[0].mxu0
        %v384 = vadd.f32 0.0, %v383
        %v385 = vpop.f32.mrb[0].mxu0
        %386 = vdwg.mxu0
        %v387 = vpack.c.bf16 %v384, %v381
        %v388 = vunpack.c.l.bf16 %v216
        %v389 = vlaneseq
        %v390 = vshrl.u32 %v389, 7
        %v391 = vsub.s32 0, %v390
        %v392 = vrot.slane %v388, %v391
        %v409 = vunpack.c.l.b16 %v200
        %v410 = vunpack.c.l.b16 %v201
        %v411 = vunpack.c.l.b16 %v202
        %v412 = vunpack.c.l.b16 %v203
        %v413 = vunpack.c.l.b16 %v204
        %v414 = vunpack.c.l.b16 %v205
        %v415 = vunpack.c.l.b16 %v206
        %v416 = vunpack.c.l.b16 %v207
        %v417 = vunpack.c.l.b16 %v208
        %v418 = vunpack.c.l.b16 %v209
        %v419 = vunpack.c.l.b16 %v210
        %v420 = vunpack.c.l.b16 %v211
        %v421 = vunpack.c.l.b16 %v212
        %v422 = vunpack.c.l.b16 %v213
        %v423 = vunpack.c.l.b16 %v214
        %v424 = vunpack.c.l.b16 %v215
        %v425 = vpack.c.b16 %v410, %v409
        %v426 = vpack.c.b16 %v412, %v411
        %v427 = vpack.c.b16 %v414, %v413
        %v428 = vpack.c.b16 %v416, %v415
        %v429 = vpack.c.b16 %v418, %v417
        %v430 = vpack.c.b16 %v420, %v419
        %v431 = vpack.c.b16 %v422, %v421
        %v432 = vpack.c.b16 %v424, %v423
        %441 = vmatprep.subr.bf16.mxu0 0
        %442 = vmatpush1.bf16.msra.mxu0 %v425
        %443 = vmatprep.subr.bf16.mxu0 0
        %444 = vmatpush1.bf16.msra.mxu0 %v426
        %445 = vmatprep.subr.bf16.mxu0 0
        %446 = vmatpush1.bf16.msra.mxu0 %v427
        %447 = vmatprep.subr.bf16.mxu0 0
        %448 = vmatpush1.bf16.msra.mxu0 %v428
        %449 = vmatprep.subr.bf16.mxu0 0
        %450 = vmatpush1.bf16.msra.mxu0 %v429
        %451 = vmatprep.subr.bf16.mxu0 0
        %452 = vmatpush1.bf16.msra.mxu0 %v430
        %453 = vmatprep.subr.bf16.mxu0 0
        %454 = vmatpush1.bf16.msra.mxu0 %v431
        %455 = vmatprep.subr.bf16.mxu0 0
        %456 = vmatpush1.bf16.msra.mxu0 %v432
        %457 = vmatprep.subr.bf16.mxu0 0
        %458 = vmatpush1.bf16.msra.mxu0 0
        %459 = vmatprep.subr.bf16.mxu0 0
        %460 = vmatpush1.bf16.msra.mxu0 0
        %461 = vmatprep.subr.bf16.mxu0 0
        %462 = vmatpush1.bf16.msra.mxu0 0
        %463 = vmatprep.subr.bf16.mxu0 0
        %464 = vmatpush1.bf16.msra.mxu0 0
        %465 = vmatprep.subr.bf16.mxu0 0
        %466 = vmatpush1.bf16.msra.mxu0 0
        %467 = vmatprep.subr.bf16.mxu0 0
        %468 = vmatpush1.bf16.msra.mxu0 0
        %469 = vmatprep.subr.bf16.mxu0 0
        %470 = vmatpush1.bf16.msra.mxu0 0
        %471 = vmatprep.subr.bf16.mxu0 0
        %472 = vmatpush1.bf16.msra.mxu0 0
        %473 = vmatprep.mubr.bf16.mxu0 0
        %474 = vmatmul.mubr.bf16.gmra.mrb[0].mxu0 %v387
        %v475 = vpop.f32.mrb[0].mxu0
        %v476 = vadd.f32 %v392, %v475
        %v477 = vpop.f32.mrb[0].mxu0
        %v478 = vpop.f32.mrb[0].mxu0
        %v479 = vadd.f32 %v392, %v478
        %v480 = vpop.f32.mrb[0].mxu0
        %481 = vdwg.mxu0
        %v482 = vmul.f32 %v476, %v476
        %v483 = vmul.f32 %v479, %v479
        %484 = vadd.xlane.f32.xlu0 %v482
        %v485 = vpop.xlane.xlu0 %484
        %486 = vadd.xlane.f32.xlu0 %v483
        %v487 = vpop.xlane.xlu0 %486
        %v488 = vmax.f32 %v485, 1e-24
        %v489 = vmax.f32 %v487, 1e-24
        %v490 = vrsqrt.pop %v488
        %v491 = vrsqrt.pop %v489
        %v492 = vmul.f32 %v476, %v490
        %v493 = vmul.f32 %v479, %v491
        %494 = vst [vmem:[%s178] sm:$0xff] %v492
        %495 = vst [vmem:[%s178 + $0x8] sm:$0xff] %v493
        %s496 = sand.u32 %s98, 1
        %s497 = scalar_lea.sflag [#allocation3], %s496
        %s498 = sand.u32 %s98, 1
        %s499 = smul.addr %s498, 16
        %s500 = scalar_lea.vmem [#allocation2], %s499
        // Predicated region
        $region33: #{gin_forward.1} parent=31 // pred_check
          %p501 = pneg %p108
        $region34: #{gin_forward.1} parent=31 // pred_check_branch
          %503 = sbr.rel (%p501) target = $region36
        $region35: #{gin_forward.1} parent=31 // pred_region
          %s505 = ssub.s32 256, 256
          %506 = vsyncadd %s497, %s505
          %s507 = smul.addr %s17, 2
          %s508 = smul.addr %s507, 128
          %s509 = scalar_lea.hbm %s3, %s508
          %s510 = sshll.u32 %s500, 4
          %s511 = int_to_ptr.vmem [resolvable:$true] %s510
          %516 = dma.vmem_to_hbm [thread:$0]  %s511, 256, %s509, %s497, 128, 128, 8
        $region36: #{gin_forward.1} parent=31 // pred_fallthru
          _
      $region32: #{gin_forward.1} parent=5 // pred_fallthru
        _
      %p517 = scmp.le.s32.totalorder 2, %s12
      // Predicated region
      $region37: #{gin_forward.1} parent=5 // pred_check
        %p518 = pneg %p517
      $region38: #{gin_forward.1} parent=5 // pred_check_branch
        %520 = sbr.rel (%p518) target = $region40
      $region39: #{gin_forward.1} parent=5 // pred_region
        %s521 = ssub.s32 %s12, 2
        // Predicated region
        $region41: #{gin_forward.1} parent=39 // pred_check
          %p522 = pneg %p114
        $region42: #{gin_forward.1} parent=39 // pred_check_branch
          %524 = sbr.rel (%p522) target = $region44
        $region43: #{gin_forward.1} parent=39 // pred_region
          %s525 = sand.u32 %s99, 1
          %s526 = scalar_lea.sflag [#allocation3], %s525
          %s527 = sand.u32 %s99, 1
          %s528 = smul.addr %s527, 16
          %s529 = scalar_lea.vmem [#allocation2], %s528
          %530 = dma.done %s526, 256
        $region44: #{gin_forward.1} parent=39 // pred_fallthru
          _
      $region40: #{gin_forward.1} parent=5 // pred_fallthru
        _
    $region6: #{gin_forward.1} parent=1 // loop_footer
      %s16 = sadd.s32 1, %s12
    $region7: #{gin_forward.1} parent=1 // loop_footer_branch
      %11 = sbr.rel target = $region3
    $region8: #{gin_forward.1} parent=1 // loop_exit
      _
    %531 = vsyncpa [#allocation3], 1
    %s532 = scalar_lea.sflag [#allocation3], 1
    %533 = vsyncpa %s532, 1

</llo_original>
